<compile_context>
chip_gen: v7x
topology: tpu7x:2x2x1
jax: 0.10.0
libtpu: 0.0.40
codegen_flags: <defaults>
</compile_context>

<pallas_src>
import math

import jax
import jax.numpy as jnp
import numpy as np
from jax.experimental import pallas as pl
from jax.experimental.pallas import tpu as pltpu


# ---------------------------------------------------------------------------
# Kernel
# ---------------------------------------------------------------------------

def _make_kernel(n_layers, activation):
    """Kernel over one (s-tile, b-tile) block.

    Ref layout:
      refs[0]                 : z block      (tb, ts*d_m)  -- natural HBM layout
      refs[1 : 1+n_layers]    : weights      layer0: (h1, ts, d_m, 1)
                                             layer i>=1: (h_out, h_in, ts, 1)
      refs[1+n_layers : -1]   : biases       (h_i, ts, 1)
      refs[-1]                : out block    (out_dim, ts, tb)
    """

    def kernel(*refs):
        z_ref = refs[0]
        w_refs = refs[1:1 + n_layers]
        b_refs = refs[1 + n_layers:1 + 2 * n_layers]
        o_ref = refs[-1]

        tb = z_ref.shape[0]
        _, ts, d_m, _ = w_refs[0].shape

        # In-VMEM relayout of the natural-layout tile:
        #   (tb, ts*d_m) --XLU 2-D transpose--> (ts*d_m, tb)
        #                --sublane split (free for d_m % 8 == 0)--> (ts, d_m, tb)
        # so the large batch axis sits on the 128-lane axis for all compute.
        zt = z_ref[...].T.reshape(ts, d_m, tb)

        # Layer 0: contract d_m on the VPU (broadcast weight over lanes,
        # multiply, sublane-reduce).  Hidden dims are tiny (2-5), so this keeps
        # the kernel on the HBM roofline instead of issuing `ts` tiny MXU
        # matmuls with a weight reload per sequence position.
        w0 = w_refs[0][...]                                 # (h1, ts, d_m, 1) f32
        b0 = b_refs[0][...]                                 # (h1, ts, 1)      f32
        feats = []
        for o in range(w0.shape[0]):
            acc = jnp.sum(zt * w0[o], axis=1) + b0[o]       # (ts, tb) f32
            feats.append(activation(acc) if activation is not None else acc)

        # Layers >= 1: tiny (h_out x h_in) per-position mixes -> explicit VPU FMAs.
        for li in range(1, n_layers):
            w = w_refs[li][...]                             # (h_out, h_in, ts, 1)
            b = b_refs[li][...]                             # (h_out, ts, 1)
            nxt = []
            for oo in range(w.shape[0]):
                acc = b[oo]                                 # (ts, 1) -> lane broadcast
                for oi in range(w.shape[1]):
                    acc = acc + w[oo, oi] * feats[oi]
                nxt.append(activation(acc) if activation is not None else acc)
            feats = nxt

        for o in range(o_ref.shape[0]):
            o_ref[o] = feats[o].astype(o_ref.dtype)

    return kernel


# ---------------------------------------------------------------------------
# Tiling helpers
# ---------------------------------------------------------------------------

def _lcm(a, b):
    return a * b // math.gcd(a, b)


def _pick_s_tile(S, d_m, max_ts=256):
    """Return (ts, S_pad) with ts == S_pad, or ts % 8 == 0 and ts*d_m % 128 == 0."""
    if S <= max_ts:
        return S, S
    step = _lcm(8, 128 // math.gcd(d_m, 128))   # step divides 128 -> step <= 128
    t = (max_ts // step) * step
    while t >= step:
        if S % t == 0:
            return t, S
        t -= step
    ts = (max_ts // step) * step                 # no aligned divisor: pad S
    return ts, ((S + ts - 1) // ts) * ts


def _pick_b_tile(B, bytes_per_b, budget):
    """Return (tb, B_pad) with tb == B_pad (== B) or tb % 128 == 0."""
    max_tb = max(128, budget // max(bytes_per_b, 1))
    if B <= max_tb:
        return B, B
    if B % 128 == 0:
        t = (max_tb // 128) * 128
        while t >= 128:
            if B % t == 0:
                return t, B
            t -= 128
    tb = (max_tb // 128) * 128                   # no aligned divisor: pad B
    return tb, ((B + tb - 1) // tb) * tb


# ---------------------------------------------------------------------------
# Wrapper
# ---------------------------------------------------------------------------

def decoder_forward(z, Ws, bs, activation=None):
    """Pallas equivalent of decoder.forward(z, idx=[2]).

    z  : (B, S, d_m)
    Ws : list of arrays shaped (1, S, Din_i, Dout_i)  (same as torch self.W)
    bs : list of arrays shaped (1, S, 1, Dout_i)      (same as torch self.b)
    returns (B, S, 1, out_dim) -- identical to the torch output shape.
    """
    B, S, d_m = z.shape
    itemsize = jnp.dtype(z.dtype).itemsize

    # Per-position parameters in transposed (column-vector) form, in f32.
    w_t = [jnp.transpose(w[0].astype(jnp.float32), (0, 2, 1)) for w in Ws]  # (S, Dout, Din)
    b_t = [jnp.transpose(b[0].astype(jnp.float32), (0, 2, 1)) for b in bs]  # (S, Dout, 1)

    if activation is None:
        # Fold the whole affine chain at trace time (pure affine algebra, f32):
        #   y = Wn^T(...(W1^T x + b1^T)...) + bn^T == W_eff x + b_eff
        w_eff, b_eff = w_t[0], b_t[0]
        for w, b in zip(w_t[1:], b_t[1:]):
            b_eff = jnp.einsum("shk,skd->shd", w, b_eff) + b
            w_eff = jnp.einsum("shk,skd->shd", w, w_eff)
        w_t, b_t = [w_eff], [b_eff]

    n_layers = len(w_t)
    h_dims = [w.shape[1] for w in w_t]          # per-layer output dims
    out_dim = h_dims[-1]

    # ---- generation-aware VMEM budget --------------------------------------
    try:
        vmem_cap = int(pltpu.get_tpu_info().vmem_capacity_bytes)
    except Exception:
        vmem_cap = 64 * 1024 * 1024             # v7x-safe fallback
    vmem_limit = max(32 * 1024 * 1024,
                     min((vmem_cap * 3) // 4, 100 * 1024 * 1024))
    # z-tile budget: 2x double-buffered input + ~3x in-kernel transpose /
    # product temporaries -> keep the raw tile near limit/8.
    tile_budget = vmem_limit // 8

    # ---- tiling (full-extent or padded tail for awkward shapes) ------------
    ts, S_pad = _pick_s_tile(S, d_m)
    tb, B_pad = _pick_b_tile(B, ts * d_m * itemsize, tile_budget)

    if S_pad != S:
        w_t = [jnp.pad(w, ((0, S_pad - S), (0, 0), (0, 0))) for w in w_t]
        b_t = [jnp.pad(b, ((0, S_pad - S), (0, 0), (0, 0))) for b in b_t]
    if S_pad != S or B_pad != B:
        z = jnp.pad(z, ((0, B_pad - B), (0, S_pad - S), (0, 0)))

    # Zero-copy lane-dense view of z: (B, S, d_m) -> (B, S*d_m).  No HBM
    # transpose; each (tb, ts*d_m) block is a set of contiguous HBM rows.
    z2 = z.reshape(B_pad, S_pad * d_m)

    # Kernel-layout parameters (tiny; rearranged at trace time so the kernel
    # never needs an in-VMEM weight relayout).
    w_kernel = [jnp.transpose(w_t[0], (1, 0, 2))[..., None]]       # (h1, S, d_m, 1)
    for w in w_t[1:]:
        w_kernel.append(jnp.transpose(w, (1, 2, 0))[..., None])    # (h_out, h_in, S, 1)
    b_kernel = [jnp.transpose(b, (1, 0, 2)) for b in b_t]           # (h, S, 1)

    grid = (S_pad // ts, B_pad // tb)           # B axis fastest -> weights stay resident

    in_specs = [pl.BlockSpec((tb, ts * d_m), lambda si, bi: (bi, si))]
    in_specs.append(
        pl.BlockSpec((h_dims[0], ts, d_m, 1), lambda si, bi: (0, si, 0, 0)))
    for li in range(1, n_layers):
        in_specs.append(
            pl.BlockSpec((h_dims[li], h_dims[li - 1], ts, 1),
                         lambda si, bi: (0, 0, si, 0)))
    for li in range(n_layers):
        in_specs.append(
            pl.BlockSpec((h_dims[li], ts, 1), lambda si, bi: (0, si, 0)))
    # Lane-dense output: batch on the lane axis (guards against masked vst).
    out_spec = pl.BlockSpec((out_dim, ts, tb), lambda si, bi: (0, si, bi))

    flops = 2 * B * S * sum(int(W.shape[2]) * int(W.shape[3]) for W in Ws)
    bytes_accessed = (z2.size * itemsize + B_pad * S_pad * out_dim * itemsize
                      + sum(w.size * 4 for w in w_kernel)
                      + sum(b.size * 4 for b in b_kernel))
    cost = pl.CostEstimate(flops=flops, transcendentals=0,
                           bytes_accessed=bytes_accessed)

    out_t = pl.pallas_call(
        _make_kernel(n_layers, activation),
        out_shape=jax.ShapeDtypeStruct((out_dim, S_pad, B_pad), z.dtype),
        grid_spec=pltpu.PrefetchScalarGridSpec(
            num_scalar_prefetch=0,
            grid=grid,
            in_specs=in_specs,
            out_specs=out_spec),
        compiler_params=pltpu.CompilerParams(
            dimension_semantics=("parallel", "parallel"),
            vmem_limit_bytes=vmem_limit),
        cost_estimate=cost,
    )(z2, *w_kernel, *b_kernel)

    # Cheap (out_dim/d_m-sized) wrapper-side transpose of the small output.
    out = jnp.transpose(out_t[:, :S, :B], (2, 1, 0))     # (B, S, out_dim)
    return out[:, :, None, :]                             # (B, S, 1, out_dim)


# ---------------------------------------------------------------------------
# Pure-JAX reference (mirrors the torch forward exactly)
# ---------------------------------------------------------------------------

def _reference_forward(z, Ws, bs, activation=None):
    zz = z[:, :, None, :]                                  # unsqueeze(2)
    for w, b in zip(Ws, bs):
        zz = jnp.matmul(zz, w) + b
        if activation is not None:
            zz = activation(zz)
    return zz


if __name__ == "__main__":
    # Small shapes consistent with the module defaults.
    B, seq_len, d_m = 8, 8, 32
    layers = [5, 5]
    out_dim = 2

    # Parameter shapes exactly as in the torch __init__.
    w_shapes = ([(1, seq_len, d_m, layers[0])]
                + [(1, seq_len, h, h) for h in layers]
                + [(1, seq_len, layers[-1], out_dim)])
    b_shapes = ([(1, seq_len, 1, layers[0])]
                + [(1, seq_len, 1, h) for h in layers]
                + [(1, seq_len, 1, out_dim)])

    key = jax.random.PRNGKey(0)
    keys = jax.random.split(key, 1 + len(w_shapes) + len(b_shapes))
    z = jax.random.normal(keys[0], (B, seq_len, d_m), dtype=jnp.float32)
    Ws = [jax.random.normal(k, s, dtype=jnp.float32)
          for k, s in zip(keys[1:1 + len(w_shapes)], w_shapes)]
    bs = [jax.random.normal(k, s, dtype=jnp.float32)
          for k, s in zip(keys[1 + len(w_shapes):], b_shapes)]

    # Default path (activation=None): trace-time affine fold -> 1-layer kernel.
    out = jax.block_until_ready(decoder_forward(z, Ws, bs))
    ref = _reference_forward(z, Ws, bs)
    np.testing.assert_allclose(np.asarray(out), np.asarray(ref),
                               rtol=1e-3, atol=1e-3)
    assert out.shape == (B, seq_len, 1, out_dim)

    # Activation path: layered kernel (activation applied after every layer,
    # including the last, exactly as in the torch forward).
    out_act = jax.block_until_ready(
        decoder_forward(z, Ws, bs, activation=jnp.tanh))
    ref_act = _reference_forward(z, Ws, bs, activation=jnp.tanh)
    np.testing.assert_allclose(np.asarray(out_act), np.asarray(ref_act),
                               rtol=1e-3, atol=1e-3)

    print("KERNEL_OK")
</pallas_src>

<mosaic_0001>
module attributes {stable_mosaic.version = 11 : i64} {
  func.func @kernel(%arg0: i32, %arg1: i32, %arg2: memref<8x256xf32, #tpu.memory_space<vmem>>, %arg3: memref<2x8x32x1xf32, #tpu.memory_space<vmem>>, %arg4: memref<2x8x1xf32, #tpu.memory_space<vmem>>, %arg5: memref<2x8x8xf32, #tpu.memory_space<vmem>>) attributes {dimension_semantics = [#tpu.dimension_semantics<parallel>, #tpu.dimension_semantics<parallel>], iteration_bounds = array<i64: 1, 1>, scalar_prefetch = 0 : i64, scratch_operands = 0 : i64, tpu.core_type = #tpu.core_type<tc>, window_params = [{transform_indices = @transform_0, window_bounds = array<i64: 8, 256>}, {transform_indices = @transform_1, window_bounds = array<i64: 2, 8, 32, 1>}, {transform_indices = @transform_2, window_bounds = array<i64: 2, 8, 1>}, {transform_indices = @transform_3, window_bounds = array<i64: 2, 8, 8>}]} {
    %c0 = arith.constant 0 : index
    %c0_0 = arith.constant 0 : index
    %0 = vector.load %arg2[%c0, %c0_0] : memref<8x256xf32, #tpu.memory_space<vmem>>, vector<8x256xf32>
    %1 = tpu.transpose %0, [1, 0] : vector<8x256xf32> -> vector<256x8xf32>
    %2 = vector.shape_cast %1 : vector<256x8xf32> to vector<8x32x8xf32>
    %c0_1 = arith.constant 0 : index
    %c0_2 = arith.constant 0 : index
    %c0_3 = arith.constant 0 : index
    %c0_4 = arith.constant 0 : index
    %3 = vector.load %arg3[%c0_1, %c0_2, %c0_3, %c0_4] : memref<2x8x32x1xf32, #tpu.memory_space<vmem>>, vector<2x8x32x1xf32>
    %c0_5 = arith.constant 0 : index
    %c0_6 = arith.constant 0 : index
    %c0_7 = arith.constant 0 : index
    %4 = vector.load %arg4[%c0_5, %c0_6, %c0_7] : memref<2x8x1xf32, #tpu.memory_space<vmem>>, vector<2x8x1xf32>
    %5 = vector.extract_strided_slice %3 {offsets = [0, 0, 0, 0], sizes = [1, 8, 32, 1], strides = [1, 1, 1, 1]} : vector<2x8x32x1xf32> to vector<1x8x32x1xf32>
    %6 = vector.shape_cast %5 : vector<1x8x32x1xf32> to vector<8x32x1xf32>
    %7 = vector.broadcast %6 : vector<8x32x1xf32> to vector<8x32x8xf32>
    %8 = arith.mulf %2, %7 : vector<8x32x8xf32>
    %cst = arith.constant dense<0.000000e+00> : vector<8x8xf32>
    %9 = vector.multi_reduction <add>, %8, %cst [1] : vector<8x32x8xf32> to vector<8x8xf32>
    %10 = vector.extract_strided_slice %4 {offsets = [0, 0, 0], sizes = [1, 8, 1], strides = [1, 1, 1]} : vector<2x8x1xf32> to vector<1x8x1xf32>
    %11 = vector.shape_cast %10 : vector<1x8x1xf32> to vector<8x1xf32>
    %12 = vector.broadcast %11 : vector<8x1xf32> to vector<8x8xf32>
    %13 = arith.addf %9, %12 : vector<8x8xf32>
    %14 = vector.extract_strided_slice %3 {offsets = [1, 0, 0, 0], sizes = [1, 8, 32, 1], strides = [1, 1, 1, 1]} : vector<2x8x32x1xf32> to vector<1x8x32x1xf32>
    %15 = vector.shape_cast %14 : vector<1x8x32x1xf32> to vector<8x32x1xf32>
    %16 = vector.broadcast %15 : vector<8x32x1xf32> to vector<8x32x8xf32>
    %17 = arith.mulf %2, %16 : vector<8x32x8xf32>
    %cst_8 = arith.constant dense<0.000000e+00> : vector<8x8xf32>
    %18 = vector.multi_reduction <add>, %17, %cst_8 [1] : vector<8x32x8xf32> to vector<8x8xf32>
    %19 = vector.extract_strided_slice %4 {offsets = [1, 0, 0], sizes = [1, 8, 1], strides = [1, 1, 1]} : vector<2x8x1xf32> to vector<1x8x1xf32>
    %20 = vector.shape_cast %19 : vector<1x8x1xf32> to vector<8x1xf32>
    %21 = vector.broadcast %20 : vector<8x1xf32> to vector<8x8xf32>
    %22 = arith.addf %18, %21 : vector<8x8xf32>
    %c0_9 = arith.constant 0 : index
    %c0_10 = arith.constant 0 : index
    %c0_11 = arith.constant 0 : index
    %23 = vector.load %arg5[%c0_9, %c0_10, %c0_11] : memref<2x8x8xf32, #tpu.memory_space<vmem>>, vector<1x8x8xf32>
    %24 = vector.shape_cast %23 : vector<1x8x8xf32> to vector<8x8xf32>
    %25 = vector.shape_cast %13 : vector<8x8xf32> to vector<1x8x8xf32>
    tpu.vector_store %arg5[%c0_9, %c0_10, %c0_11], %25 {strides = array<i32>} : memref<2x8x8xf32, #tpu.memory_space<vmem>>, vector<1x8x8xf32>,
    %c1 = arith.constant 1 : index
    %c0_12 = arith.constant 0 : index
    %c0_13 = arith.constant 0 : index
    %26 = vector.load %arg5[%c1, %c0_12, %c0_13] : memref<2x8x8xf32, #tpu.memory_space<vmem>>, vector<1x8x8xf32>
    %27 = vector.shape_cast %26 : vector<1x8x8xf32> to vector<8x8xf32>
    %28 = vector.shape_cast %22 : vector<8x8xf32> to vector<1x8x8xf32>
    tpu.vector_store %arg5[%c1, %c0_12, %c0_13], %28 {strides = array<i32>} : memref<2x8x8xf32, #tpu.memory_space<vmem>>, vector<1x8x8xf32>,
    return
  }
  func.func @transform_0(%arg0: i32, %arg1: i32) -> (i32, i32) {
    %c0_i32 = arith.constant 0 : i32
    return %arg1, %arg0 : i32, i32
  }
  func.func @transform_1(%arg0: i32, %arg1: i32) -> (i32, i32, i32, i32) {
    %c0_i32 = arith.constant 0 : i32
    %c0_i32_0 = arith.constant 0 : i32
    %c0_i32_1 = arith.constant 0 : i32
    %c0_i32_2 = arith.constant 0 : i32
    return %c0_i32, %arg0, %c0_i32_0, %c0_i32_1 : i32, i32, i32, i32
  }
  func.func @transform_2(%arg0: i32, %arg1: i32) -> (i32, i32, i32) {
    %c0_i32 = arith.constant 0 : i32
    %c0_i32_0 = arith.constant 0 : i32
    %c0_i32_1 = arith.constant 0 : i32
    return %c0_i32, %arg0, %c0_i32_0 : i32, i32, i32
  }
  func.func @transform_3(%arg0: i32, %arg1: i32) -> (i32, i32, i32) {
    %c0_i32 = arith.constant 0 : i32
    %c0_i32_0 = arith.constant 0 : i32
    return %c0_i32, %arg0, %arg1 : i32, i32, i32
  }
}

</mosaic_0001>

<llo_original>
// kernel: tpu_custom_call.1
$region0: #{tpu_custom_call.1}
  #allocation0 [shape = 'u32[]', space=smem, size = 0x4, offset = 0x4, fixed_abs, tag = 'smem constant byte address 0x4 - core index']
  #allocation1 [shape = 'u32[144,128]{1,0:T(1,128)}', space=vmem, size = 0x12000, scoped, tag = 'internal scratch']
  %s0 = inlined_call_operand.vmem [shape: f32[8,256], index: 0, kind: input, shape index: {}]
  %s1 = inlined_call_operand.vmem [shape: f32[2,8,32,1], index: 1, kind: input, shape index: {}]
  %s2 = inlined_call_operand.vmem [shape: f32[2,8,1], index: 2, kind: input, shape index: {}]
  %s3 = inlined_call_operand.hbm [shape: f32[2,8,8], index: 3, kind: output, shape index: {}]
  %s4 = sld [smem:[#allocation0]]
  $region22: #{tpu_custom_call.1} parent=0
    _
  %s6 = ssub.s32 1, %s4
  %s7 = scalar_select 0, %s6, %s4
  $region1: #{tpu_custom_call.1} parent=0
    #allocation2 [shape = 'u8[8192]{0}', space=vmem, size = 0x2000, scoped, tag = 'output window, operand 0, single buffered']
    #allocation3 [shape = 's32[1]{0}', space=sflag, size = 0x4, scoped, tag = 'scoped memory for tpu_custom_call.1']
    %8 = vsyncpa [#allocation3], 0
    // Predicated region
    $region2: #{tpu_custom_call.1} parent=1 // pred_check
      _
    $region3: #{tpu_custom_call.1} parent=1 // pred_check_branch
      %10 = sbr.rel (0) target = $region5
    $region4: #{tpu_custom_call.1} parent=1 // pred_region
      _
    $region5: #{tpu_custom_call.1} parent=1 // pred_fallthru
      _
    // Predicated region
    $region6: #{tpu_custom_call.1} parent=1 // pred_check
      _
    $region7: #{tpu_custom_call.1} parent=1 // pred_check_branch
      %12 = sbr.rel (0) target = $region9
    $region8: #{tpu_custom_call.1} parent=1 // pred_region
      _
    $region9: #{tpu_custom_call.1} parent=1 // pred_fallthru
      _
    // Predicated region
    $region10: #{tpu_custom_call.1} parent=1 // pred_check
      _
    $region11: #{tpu_custom_call.1} parent=1 // pred_check_branch
      %14 = sbr.rel (0) target = $region13
    $region12: #{tpu_custom_call.1} parent=1 // pred_region
      _
    $region13: #{tpu_custom_call.1} parent=1 // pred_fallthru
      _
    %v15 = vld [vmem:[%s0] sm:$0xff]
    %v16 = vld [vmem:[%s0 + $0x8] sm:$0xff]
    %17 = vxpose.xlu0.b32.start [1/16] %v15, 128
    %18 = vxpose.xlu0.b32.cont [2/16] 0.0, 128
    %19 = vxpose.xlu0.b32.cont [3/16] 0.0, 128
    %20 = vxpose.xlu0.b32.cont [4/16] 0.0, 128
    %21 = vxpose.xlu0.b32.cont [5/16] 0.0, 128
    %22 = vxpose.xlu0.b32.cont [6/16] 0.0, 128
    %23 = vxpose.xlu0.b32.cont [7/16] 0.0, 128
    %24 = vxpose.xlu0.b32.cont [8/16] 0.0, 128
    %25 = vxpose.xlu0.b32.cont [9/16] 0.0, 128
    %26 = vxpose.xlu0.b32.cont [10/16] 0.0, 128
    %27 = vxpose.xlu0.b32.cont [11/16] 0.0, 128
    %28 = vxpose.xlu0.b32.cont [12/16] 0.0, 128
    %29 = vxpose.xlu0.b32.cont [13/16] 0.0, 128
    %30 = vxpose.xlu0.b32.cont [14/16] 0.0, 128
    %31 = vxpose.xlu0.b32.cont [15/16] 0.0, 128
    %32 = vxpose.xlu0.b32.end [16/16] 0.0, 128
    %v33 = vpop.trf.xlu0
    %v34 = vpop.trf.xlu0
    %v35 = vpop.trf.xlu0
    %v36 = vpop.trf.xlu0
    %v37 = vpop.trf.xlu0
    %v38 = vpop.trf.xlu0
    %v39 = vpop.trf.xlu0
    %v40 = vpop.trf.xlu0
    %v41 = vpop.trf.xlu0
    %v42 = vpop.trf.xlu0
    %v43 = vpop.trf.xlu0
    %v44 = vpop.trf.xlu0
    %v45 = vpop.trf.xlu0
    %v46 = vpop.trf.xlu0
    %v47 = vpop.trf.xlu0
    %v48 = vpop.trf.xlu0
    %49 = vxpose.xlu0.b32.start [1/16] %v16, 128
    %50 = vxpose.xlu0.b32.cont [2/16] 0.0, 128
    %51 = vxpose.xlu0.b32.cont [3/16] 0.0, 128
    %52 = vxpose.xlu0.b32.cont [4/16] 0.0, 128
    %53 = vxpose.xlu0.b32.cont [5/16] 0.0, 128
    %54 = vxpose.xlu0.b32.cont [6/16] 0.0, 128
    %55 = vxpose.xlu0.b32.cont [7/16] 0.0, 128
    %56 = vxpose.xlu0.b32.cont [8/16] 0.0, 128
    %57 = vxpose.xlu0.b32.cont [9/16] 0.0, 128
    %58 = vxpose.xlu0.b32.cont [10/16] 0.0, 128
    %59 = vxpose.xlu0.b32.cont [11/16] 0.0, 128
    %60 = vxpose.xlu0.b32.cont [12/16] 0.0, 128
    %61 = vxpose.xlu0.b32.cont [13/16] 0.0, 128
    %62 = vxpose.xlu0.b32.cont [14/16] 0.0, 128
    %63 = vxpose.xlu0.b32.cont [15/16] 0.0, 128
    %64 = vxpose.xlu0.b32.end [16/16] 0.0, 128
    %v65 = vpop.trf.xlu0
    %v66 = vpop.trf.xlu0
    %v67 = vpop.trf.xlu0
    %v68 = vpop.trf.xlu0
    %v69 = vpop.trf.xlu0
    %v70 = vpop.trf.xlu0
    %v71 = vpop.trf.xlu0
    %v72 = vpop.trf.xlu0
    %v73 = vpop.trf.xlu0
    %v74 = vpop.trf.xlu0
    %v75 = vpop.trf.xlu0
    %v76 = vpop.trf.xlu0
    %v77 = vpop.trf.xlu0
    %v78 = vpop.trf.xlu0
    %v79 = vpop.trf.xlu0
    %v80 = vpop.trf.xlu0
    %v81 = vld [vmem:[%s1] sm:$0xff]
    %v82 = vld [vmem:[%s1 + $0x8] sm:$0xff]
    %v83 = vld [vmem:[%s1 + $0x10] sm:$0xff]
    %v84 = vld [vmem:[%s1 + $0x18] sm:$0xff]
    %v85 = vld [vmem:[%s1 + $0x20] sm:$0xff]
    %v86 = vld [vmem:[%s1 + $0x28] sm:$0xff]
    %v87 = vld [vmem:[%s1 + $0x30] sm:$0xff]
    %v88 = vld [vmem:[%s1 + $0x38] sm:$0xff]
    %v89 = vld [vmem:[%s1 + $0x40] sm:$0xff]
    %v90 = vld [vmem:[%s1 + $0x48] sm:$0xff]
    %v91 = vld [vmem:[%s1 + $0x50] sm:$0xff]
    %v92 = vld [vmem:[%s1 + $0x58] sm:$0xff]
    %v93 = vld [vmem:[%s1 + $0x60] sm:$0xff]
    %v94 = vld [vmem:[%s1 + $0x68] sm:$0xff]
    %v95 = vld [vmem:[%s1 + $0x70] sm:$0xff]
    %v96 = vld [vmem:[%s1 + $0x78] sm:$0xff]
    %v97 = vld [vmem:[%s1 + $0x80] sm:$0xff]
    %v98 = vld [vmem:[%s1 + $0x88] sm:$0xff]
    %v99 = vld [vmem:[%s1 + $0x90] sm:$0xff]
    %v100 = vld [vmem:[%s1 + $0x98] sm:$0xff]
    %v101 = vld [vmem:[%s1 + $0xa0] sm:$0xff]
    %v102 = vld [vmem:[%s1 + $0xa8] sm:$0xff]
    %v103 = vld [vmem:[%s1 + $0xb0] sm:$0xff]
    %v104 = vld [vmem:[%s1 + $0xb8] sm:$0xff]
    %v105 = vld [vmem:[%s1 + $0xc0] sm:$0xff]
    %v106 = vld [vmem:[%s1 + $0xc8] sm:$0xff]
    %v107 = vld [vmem:[%s1 + $0xd0] sm:$0xff]
    %v108 = vld [vmem:[%s1 + $0xd8] sm:$0xff]
    %v109 = vld [vmem:[%s1 + $0xe0] sm:$0xff]
    %v110 = vld [vmem:[%s1 + $0xe8] sm:$0xff]
    %v111 = vld [vmem:[%s1 + $0xf0] sm:$0xff]
    %v112 = vld [vmem:[%s1 + $0xf8] sm:$0xff]
    %v113 = vld [vmem:[%s1 + $0x100] sm:$0xff]
    %v114 = vld [vmem:[%s1 + $0x108] sm:$0xff]
    %v115 = vld [vmem:[%s1 + $0x110] sm:$0xff]
    %v116 = vld [vmem:[%s1 + $0x118] sm:$0xff]
    %v117 = vld [vmem:[%s1 + $0x120] sm:$0xff]
    %v118 = vld [vmem:[%s1 + $0x128] sm:$0xff]
    %v119 = vld [vmem:[%s1 + $0x130] sm:$0xff]
    %v120 = vld [vmem:[%s1 + $0x138] sm:$0xff]
    %v121 = vld [vmem:[%s1 + $0x140] sm:$0xff]
    %v122 = vld [vmem:[%s1 + $0x148] sm:$0xff]
    %v123 = vld [vmem:[%s1 + $0x150] sm:$0xff]
    %v124 = vld [vmem:[%s1 + $0x158] sm:$0xff]
    %v125 = vld [vmem:[%s1 + $0x160] sm:$0xff]
    %v126 = vld [vmem:[%s1 + $0x168] sm:$0xff]
    %v127 = vld [vmem:[%s1 + $0x170] sm:$0xff]
    %v128 = vld [vmem:[%s1 + $0x178] sm:$0xff]
    %v129 = vld [vmem:[%s1 + $0x180] sm:$0xff]
    %v130 = vld [vmem:[%s1 + $0x188] sm:$0xff]
    %v131 = vld [vmem:[%s1 + $0x190] sm:$0xff]
    %v132 = vld [vmem:[%s1 + $0x198] sm:$0xff]
    %v133 = vld [vmem:[%s1 + $0x1a0] sm:$0xff]
    %v134 = vld [vmem:[%s1 + $0x1a8] sm:$0xff]
    %v135 = vld [vmem:[%s1 + $0x1b0] sm:$0xff]
    %v136 = vld [vmem:[%s1 + $0x1b8] sm:$0xff]
    %v137 = vld [vmem:[%s1 + $0x1c0] sm:$0xff]
    %v138 = vld [vmem:[%s1 + $0x1c8] sm:$0xff]
    %v139 = vld [vmem:[%s1 + $0x1d0] sm:$0xff]
    %v140 = vld [vmem:[%s1 + $0x1d8] sm:$0xff]
    %v141 = vld [vmem:[%s1 + $0x1e0] sm:$0xff]
    %v142 = vld [vmem:[%s1 + $0x1e8] sm:$0xff]
    %v143 = vld [vmem:[%s1 + $0x1f0] sm:$0xff]
    %v144 = vld [vmem:[%s1 + $0x1f8] sm:$0xff]
    %v145 = vld [vmem:[%s2] sm:$0xff]
    %v146 = vld [vmem:[%s2 + $0x8] sm:$0xff]
    %148 = vset.pattern.permute.xlu0 0
    %149 = vperm.xlu0 %148, %v81
    %v150 = vpop.permute.xlu0 %149
    %153 = vset.pattern.permute.xlu0 0
    %154 = vperm.xlu0 %153, %v82
    %v155 = vpop.permute.xlu0 %154
    %158 = vset.pattern.permute.xlu0 0
    %159 = vperm.xlu0 %158, %v83
    %v160 = vpop.permute.xlu0 %159
    %163 = vset.pattern.permute.xlu0 0
    %164 = vperm.xlu0 %163, %v84
    %v165 = vpop.permute.xlu0 %164
    %168 = vset.pattern.permute.xlu0 0
    %169 = vperm.xlu0 %168, %v85
    %v170 = vpop.permute.xlu0 %169
    %173 = vset.pattern.permute.xlu0 0
    %174 = vperm.xlu0 %173, %v86
    %v175 = vpop.permute.xlu0 %174
    %178 = vset.pattern.permute.xlu0 0
    %179 = vperm.xlu0 %178, %v87
    %v180 = vpop.permute.xlu0 %179
    %183 = vset.pattern.permute.xlu0 0
    %184 = vperm.xlu0 %183, %v88
    %v185 = vpop.permute.xlu0 %184
    %188 = vset.pattern.permute.xlu0 0
    %189 = vperm.xlu0 %188, %v89
    %v190 = vpop.permute.xlu0 %189
    %193 = vset.pattern.permute.xlu0 0
    %194 = vperm.xlu0 %193, %v90
    %v195 = vpop.permute.xlu0 %194
    %198 = vset.pattern.permute.xlu0 0
    %199 = vperm.xlu0 %198, %v91
    %v200 = vpop.permute.xlu0 %199
    %203 = vset.pattern.permute.xlu0 0
    %204 = vperm.xlu0 %203, %v92
    %v205 = vpop.permute.xlu0 %204
    %208 = vset.pattern.permute.xlu0 0
    %209 = vperm.xlu0 %208, %v93
    %v210 = vpop.permute.xlu0 %209
    %213 = vset.pattern.permute.xlu0 0
    %214 = vperm.xlu0 %213, %v94
    %v215 = vpop.permute.xlu0 %214
    %218 = vset.pattern.permute.xlu0 0
    %219 = vperm.xlu0 %218, %v95
    %v220 = vpop.permute.xlu0 %219
    %223 = vset.pattern.permute.xlu0 0
    %224 = vperm.xlu0 %223, %v96
    %v225 = vpop.permute.xlu0 %224
    %228 = vset.pattern.permute.xlu0 0
    %229 = vperm.xlu0 %228, %v97
    %v230 = vpop.permute.xlu0 %229
    %233 = vset.pattern.permute.xlu0 0
    %234 = vperm.xlu0 %233, %v98
    %v235 = vpop.permute.xlu0 %234
    %238 = vset.pattern.permute.xlu0 0
    %239 = vperm.xlu0 %238, %v99
    %v240 = vpop.permute.xlu0 %239
    %243 = vset.pattern.permute.xlu0 0
    %244 = vperm.xlu0 %243, %v100
    %v245 = vpop.permute.xlu0 %244
    %248 = vset.pattern.permute.xlu0 0
    %249 = vperm.xlu0 %248, %v101
    %v250 = vpop.permute.xlu0 %249
    %253 = vset.pattern.permute.xlu0 0
    %254 = vperm.xlu0 %253, %v102
    %v255 = vpop.permute.xlu0 %254
    %258 = vset.pattern.permute.xlu0 0
    %259 = vperm.xlu0 %258, %v103
    %v260 = vpop.permute.xlu0 %259
    %263 = vset.pattern.permute.xlu0 0
    %264 = vperm.xlu0 %263, %v104
    %v265 = vpop.permute.xlu0 %264
    %268 = vset.pattern.permute.xlu0 0
    %269 = vperm.xlu0 %268, %v105
    %v270 = vpop.permute.xlu0 %269
    %273 = vset.pattern.permute.xlu0 0
    %274 = vperm.xlu0 %273, %v106
    %v275 = vpop.permute.xlu0 %274
    %278 = vset.pattern.permute.xlu0 0
    %279 = vperm.xlu0 %278, %v107
    %v280 = vpop.permute.xlu0 %279
    %283 = vset.pattern.permute.xlu0 0
    %284 = vperm.xlu0 %283, %v108
    %v285 = vpop.permute.xlu0 %284
    %288 = vset.pattern.permute.xlu0 0
    %289 = vperm.xlu0 %288, %v109
    %v290 = vpop.permute.xlu0 %289
    %293 = vset.pattern.permute.xlu0 0
    %294 = vperm.xlu0 %293, %v110
    %v295 = vpop.permute.xlu0 %294
    %298 = vset.pattern.permute.xlu0 0
    %299 = vperm.xlu0 %298, %v111
    %v300 = vpop.permute.xlu0 %299
    %303 = vset.pattern.permute.xlu0 0
    %304 = vperm.xlu0 %303, %v112
    %v305 = vpop.permute.xlu0 %304
    %v307 = vmul.f32 %v33, %v150
    %v308 = vmul.f32 %v34, %v155
    %v309 = vmul.f32 %v35, %v160
    %v310 = vmul.f32 %v36, %v165
    %v311 = vmul.f32 %v37, %v170
    %v312 = vmul.f32 %v38, %v175
    %v313 = vmul.f32 %v39, %v180
    %v314 = vmul.f32 %v40, %v185
    %v315 = vmul.f32 %v41, %v190
    %v316 = vmul.f32 %v42, %v195
    %v317 = vmul.f32 %v43, %v200
    %v318 = vmul.f32 %v44, %v205
    %v319 = vmul.f32 %v45, %v210
    %v320 = vmul.f32 %v46, %v215
    %v321 = vmul.f32 %v47, %v220
    %v322 = vmul.f32 %v48, %v225
    %v323 = vmul.f32 %v65, %v230
    %v324 = vmul.f32 %v66, %v235
    %v325 = vmul.f32 %v67, %v240
    %v326 = vmul.f32 %v68, %v245
    %v327 = vmul.f32 %v69, %v250
    %v328 = vmul.f32 %v70, %v255
    %v329 = vmul.f32 %v71, %v260
    %v330 = vmul.f32 %v72, %v265
    %v331 = vmul.f32 %v73, %v270
    %v332 = vmul.f32 %v74, %v275
    %v333 = vmul.f32 %v75, %v280
    %v334 = vmul.f32 %v76, %v285
    %v335 = vmul.f32 %v77, %v290
    %v336 = vmul.f32 %v78, %v295
    %v337 = vmul.f32 %v79, %v300
    %v338 = vmul.f32 %v80, %v305
    %vm339 = vcmask 64512
    %v340 = vsel %vm339, %v307, 0.0
    %v341 = vsel %vm339, %v308, 0.0
    %v342 = vadd.f32 %v340, %v341
    %v343 = vsel %vm339, %v309, 0.0
    %v344 = vadd.f32 %v342, %v343
    %v345 = vsel %vm339, %v310, 0.0
    %v346 = vadd.f32 %v344, %v345
    %v347 = vrot.slane %v346, 4
    %v348 = vadd.f32 %v346, %v347
    %v349 = vrot.slane %v348, 2
    %v350 = vadd.f32 %v348, %v349
    %v351 = vrot.slane %v350, 1
    %v352 = vadd.f32 %v350, %v351
    %v353 = vsel %vm339, %v311, 0.0
    %v354 = vsel %vm339, %v312, 0.0
    %v355 = vadd.f32 %v353, %v354
    %v356 = vsel %vm339, %v313, 0.0
    %v357 = vadd.f32 %v355, %v356
    %v358 = vsel %vm339, %v314, 0.0
    %v359 = vadd.f32 %v357, %v358
    %v360 = vrot.slane %v359, 4
    %v361 = vadd.f32 %v359, %v360
    %v362 = vrot.slane %v361, 2
    %v363 = vadd.f32 %v361, %v362
    %v364 = vrot.slane %v363, 1
    %v365 = vadd.f32 %v363, %v364
    %v366 = vsel %vm339, %v315, 0.0
    %v367 = vsel %vm339, %v316, 0.0
    %v368 = vadd.f32 %v366, %v367
    %v369 = vsel %vm339, %v317, 0.0
    %v370 = vadd.f32 %v368, %v369
    %v371 = vsel %vm339, %v318, 0.0
    %v372 = vadd.f32 %v370, %v371
    %v373 = vrot.slane %v372, 4
    %v374 = vadd.f32 %v372, %v373
    %v375 = vrot.slane %v374, 2
    %v376 = vadd.f32 %v374, %v375
    %v377 = vrot.slane %v376, 1
    %v378 = vadd.f32 %v376, %v377
    %v379 = vsel %vm339, %v319, 0.0
    %v380 = vsel %vm339, %v320, 0.0
    %v381 = vadd.f32 %v379, %v380
    %v382 = vsel %vm339, %v321, 0.0
    %v383 = vadd.f32 %v381, %v382
    %v384 = vsel %vm339, %v322, 0.0
    %v385 = vadd.f32 %v383, %v384
    %v386 = vrot.slane %v385, 4
    %v387 = vadd.f32 %v385, %v386
    %v388 = vrot.slane %v387, 2
    %v389 = vadd.f32 %v387, %v388
    %v390 = vrot.slane %v389, 1
    %v391 = vadd.f32 %v389, %v390
    %v392 = vsel %vm339, %v323, 0.0
    %v393 = vsel %vm339, %v324, 0.0
    %v394 = vadd.f32 %v392, %v393
    %v395 = vsel %vm339, %v325, 0.0
    %v396 = vadd.f32 %v394, %v395
    %v397 = vsel %vm339, %v326, 0.0
    %v398 = vadd.f32 %v396, %v397
    %v399 = vrot.slane %v398, 4
    %v400 = vadd.f32 %v398, %v399
    %v401 = vrot.slane %v400, 2
    %v402 = vadd.f32 %v400, %v401
    %v403 = vrot.slane %v402, 1
    %v404 = vadd.f32 %v402, %v403
    %v405 = vsel %vm339, %v327, 0.0
    %v406 = vsel %vm339, %v328, 0.0
    %v407 = vadd.f32 %v405, %v406
    %v408 = vsel %vm339, %v329, 0.0
    %v409 = vadd.f32 %v407, %v408
    %v410 = vsel %vm339, %v330, 0.0
    %v411 = vadd.f32 %v409, %v410
    %v412 = vrot.slane %v411, 4
    %v413 = vadd.f32 %v411, %v412
    %v414 = vrot.slane %v413, 2
    %v415 = vadd.f32 %v413, %v414
    %v416 = vrot.slane %v415, 1
    %v417 = vadd.f32 %v415, %v416
    %v418 = vsel %vm339, %v331, 0.0
    %v419 = vsel %vm339, %v332, 0.0
    %v420 = vadd.f32 %v418, %v419
    %v421 = vsel %vm339, %v333, 0.0
    %v422 = vadd.f32 %v420, %v421
    %v423 = vsel %vm339, %v334, 0.0
    %v424 = vadd.f32 %v422, %v423
    %v425 = vrot.slane %v424, 4
    %v426 = vadd.f32 %v424, %v425
    %v427 = vrot.slane %v426, 2
    %v428 = vadd.f32 %v426, %v427
    %v429 = vrot.slane %v428, 1
    %v430 = vadd.f32 %v428, %v429
    %v431 = vsel %vm339, %v335, 0.0
    %v432 = vsel %vm339, %v336, 0.0
    %v433 = vadd.f32 %v431, %v432
    %v434 = vsel %vm339, %v337, 0.0
    %v435 = vadd.f32 %v433, %v434
    %v436 = vsel %vm339, %v338, 0.0
    %v437 = vadd.f32 %v435, %v436
    %v438 = vrot.slane %v437, 4
    %v439 = vadd.f32 %v437, %v438
    %v440 = vrot.slane %v439, 2
    %v441 = vadd.f32 %v439, %v440
    %v442 = vrot.slane %v441, 1
    %v443 = vadd.f32 %v441, %v442
    %445 = vset.pattern.permute.xlu0 0
    %446 = vperm.xlu0 %445, %v145
    %v447 = vpop.permute.xlu0 %446
    %v448 = vrot.slane %v447, 1
    %v449 = vrot.slane %v447, 2
    %v450 = vrot.slane %v447, 3
    %v451 = vrot.slane %v447, 4
    %v452 = vrot.slane %v447, 5
    %v453 = vrot.slane %v447, 6
    %v454 = vrot.slane %v447, 7
    %v463 = vadd.f32 %v352, %v447
    %v464 = vadd.f32 %v365, %v448
    %v465 = vadd.f32 %v378, %v449
    %v466 = vadd.f32 %v391, %v450
    %v467 = vadd.f32 %v404, %v451
    %v468 = vadd.f32 %v417, %v452
    %v469 = vadd.f32 %v430, %v453
    %v470 = vadd.f32 %v443, %v454
    %472 = vset.pattern.permute.xlu0 0
    %473 = vperm.xlu0 %472, %v113
    %v474 = vpop.permute.xlu0 %473
    %477 = vset.pattern.permute.xlu0 0
    %478 = vperm.xlu0 %477, %v114
    %v479 = vpop.permute.xlu0 %478
    %482 = vset.pattern.permute.xlu0 0
    %483 = vperm.xlu0 %482, %v115
    %v484 = vpop.permute.xlu0 %483
    %487 = vset.pattern.permute.xlu0 0
    %488 = vperm.xlu0 %487, %v116
    %v489 = vpop.permute.xlu0 %488
    %492 = vset.pattern.permute.xlu0 0
    %493 = vperm.xlu0 %492, %v117
    %v494 = vpop.permute.xlu0 %493
    %497 = vset.pattern.permute.xlu0 0
    %498 = vperm.xlu0 %497, %v118
    %v499 = vpop.permute.xlu0 %498
    %502 = vset.pattern.permute.xlu0 0
    %503 = vperm.xlu0 %502, %v119
    %v504 = vpop.permute.xlu0 %503
    %507 = vset.pattern.permute.xlu0 0
    %508 = vperm.xlu0 %507, %v120
    %v509 = vpop.permute.xlu0 %508
    %512 = vset.pattern.permute.xlu0 0
    %513 = vperm.xlu0 %512, %v121
    %v514 = vpop.permute.xlu0 %513
    %517 = vset.pattern.permute.xlu0 0
    %518 = vperm.xlu0 %517, %v122
    %v519 = vpop.permute.xlu0 %518
    %522 = vset.pattern.permute.xlu0 0
    %523 = vperm.xlu0 %522, %v123
    %v524 = vpop.permute.xlu0 %523
    %527 = vset.pattern.permute.xlu0 0
    %528 = vperm.xlu0 %527, %v124
    %v529 = vpop.permute.xlu0 %528
    %532 = vset.pattern.permute.xlu0 0
    %533 = vperm.xlu0 %532, %v125
    %v534 = vpop.permute.xlu0 %533
    %537 = vset.pattern.permute.xlu0 0
    %538 = vperm.xlu0 %537, %v126
    %v539 = vpop.permute.xlu0 %538
    %542 = vset.pattern.permute.xlu0 0
    %543 = vperm.xlu0 %542, %v127
    %v544 = vpop.permute.xlu0 %543
    %547 = vset.pattern.permute.xlu0 0
    %548 = vperm.xlu0 %547, %v128
    %v549 = vpop.permute.xlu0 %548
    %552 = vset.pattern.permute.xlu0 0
    %553 = vperm.xlu0 %552, %v129
    %v554 = vpop.permute.xlu0 %553
    %557 = vset.pattern.permute.xlu0 0
    %558 = vperm.xlu0 %557, %v130
    %v559 = vpop.permute.xlu0 %558
    %562 = vset.pattern.permute.xlu0 0
    %563 = vperm.xlu0 %562, %v131
    %v564 = vpop.permute.xlu0 %563
    %567 = vset.pattern.permute.xlu0 0
    %568 = vperm.xlu0 %567, %v132
    %v569 = vpop.permute.xlu0 %568
    %572 = vset.pattern.permute.xlu0 0
    %573 = vperm.xlu0 %572, %v133
    %v574 = vpop.permute.xlu0 %573
    %577 = vset.pattern.permute.xlu0 0
    %578 = vperm.xlu0 %577, %v134
    %v579 = vpop.permute.xlu0 %578
    %582 = vset.pattern.permute.xlu0 0
    %583 = vperm.xlu0 %582, %v135
    %v584 = vpop.permute.xlu0 %583
    %587 = vset.pattern.permute.xlu0 0
    %588 = vperm.xlu0 %587, %v136
    %v589 = vpop.permute.xlu0 %588
    %592 = vset.pattern.permute.xlu0 0
    %593 = vperm.xlu0 %592, %v137
    %v594 = vpop.permute.xlu0 %593
    %597 = vset.pattern.permute.xlu0 0
    %598 = vperm.xlu0 %597, %v138
    %v599 = vpop.permute.xlu0 %598
    %602 = vset.pattern.permute.xlu0 0
    %603 = vperm.xlu0 %602, %v139
    %v604 = vpop.permute.xlu0 %603
    %607 = vset.pattern.permute.xlu0 0
    %608 = vperm.xlu0 %607, %v140
    %v609 = vpop.permute.xlu0 %608
    %612 = vset.pattern.permute.xlu0 0
    %613 = vperm.xlu0 %612, %v141
    %v614 = vpop.permute.xlu0 %613
    %617 = vset.pattern.permute.xlu0 0
    %618 = vperm.xlu0 %617, %v142
    %v619 = vpop.permute.xlu0 %618
    %622 = vset.pattern.permute.xlu0 0
    %623 = vperm.xlu0 %622, %v143
    %v624 = vpop.permute.xlu0 %623
    %627 = vset.pattern.permute.xlu0 0
    %628 = vperm.xlu0 %627, %v144
    %v629 = vpop.permute.xlu0 %628
    %v631 = vmul.f32 %v33, %v474
    %v632 = vmul.f32 %v34, %v479
    %v633 = vmul.f32 %v35, %v484
    %v634 = vmul.f32 %v36, %v489
    %v635 = vmul.f32 %v37, %v494
    %v636 = vmul.f32 %v38, %v499
    %v637 = vmul.f32 %v39, %v504
    %v638 = vmul.f32 %v40, %v509
    %v639 = vmul.f32 %v41, %v514
    %v640 = vmul.f32 %v42, %v519
    %v641 = vmul.f32 %v43, %v524
    %v642 = vmul.f32 %v44, %v529
    %v643 = vmul.f32 %v45, %v534
    %v644 = vmul.f32 %v46, %v539
    %v645 = vmul.f32 %v47, %v544
    %v646 = vmul.f32 %v48, %v549
    %v647 = vmul.f32 %v65, %v554
    %v648 = vmul.f32 %v66, %v559
    %v649 = vmul.f32 %v67, %v564
    %v650 = vmul.f32 %v68, %v569
    %v651 = vmul.f32 %v69, %v574
    %v652 = vmul.f32 %v70, %v579
    %v653 = vmul.f32 %v71, %v584
    %v654 = vmul.f32 %v72, %v589
    %v655 = vmul.f32 %v73, %v594
    %v656 = vmul.f32 %v74, %v599
    %v657 = vmul.f32 %v75, %v604
    %v658 = vmul.f32 %v76, %v609
    %v659 = vmul.f32 %v77, %v614
    %v660 = vmul.f32 %v78, %v619
    %v661 = vmul.f32 %v79, %v624
    %v662 = vmul.f32 %v80, %v629
    %v663 = vsel %vm339, %v631, 0.0
    %v664 = vsel %vm339, %v632, 0.0
    %v665 = vadd.f32 %v663, %v664
    %v666 = vsel %vm339, %v633, 0.0
    %v667 = vadd.f32 %v665, %v666
    %v668 = vsel %vm339, %v634, 0.0
    %v669 = vadd.f32 %v667, %v668
    %v670 = vrot.slane %v669, 4
    %v671 = vadd.f32 %v669, %v670
    %v672 = vrot.slane %v671, 2
    %v673 = vadd.f32 %v671, %v672
    %v674 = vrot.slane %v673, 1
    %v675 = vadd.f32 %v673, %v674
    %v676 = vsel %vm339, %v635, 0.0
    %v677 = vsel %vm339, %v636, 0.0
    %v678 = vadd.f32 %v676, %v677
    %v679 = vsel %vm339, %v637, 0.0
    %v680 = vadd.f32 %v678, %v679
    %v681 = vsel %vm339, %v638, 0.0
    %v682 = vadd.f32 %v680, %v681
    %v683 = vrot.slane %v682, 4
    %v684 = vadd.f32 %v682, %v683
    %v685 = vrot.slane %v684, 2
    %v686 = vadd.f32 %v684, %v685
    %v687 = vrot.slane %v686, 1
    %v688 = vadd.f32 %v686, %v687
    %v689 = vsel %vm339, %v639, 0.0
    %v690 = vsel %vm339, %v640, 0.0
    %v691 = vadd.f32 %v689, %v690
    %v692 = vsel %vm339, %v641, 0.0
    %v693 = vadd.f32 %v691, %v692
    %v694 = vsel %vm339, %v642, 0.0
    %v695 = vadd.f32 %v693, %v694
    %v696 = vrot.slane %v695, 4
    %v697 = vadd.f32 %v695, %v696
    %v698 = vrot.slane %v697, 2
    %v699 = vadd.f32 %v697, %v698
    %v700 = vrot.slane %v699, 1
    %v701 = vadd.f32 %v699, %v700
    %v702 = vsel %vm339, %v643, 0.0
    %v703 = vsel %vm339, %v644, 0.0
    %v704 = vadd.f32 %v702, %v703
    %v705 = vsel %vm339, %v645, 0.0
    %v706 = vadd.f32 %v704, %v705
    %v707 = vsel %vm339, %v646, 0.0
    %v708 = vadd.f32 %v706, %v707
    %v709 = vrot.slane %v708, 4
    %v710 = vadd.f32 %v708, %v709
    %v711 = vrot.slane %v710, 2
    %v712 = vadd.f32 %v710, %v711
    %v713 = vrot.slane %v712, 1
    %v714 = vadd.f32 %v712, %v713
    %v715 = vsel %vm339, %v647, 0.0
    %v716 = vsel %vm339, %v648, 0.0
    %v717 = vadd.f32 %v715, %v716
    %v718 = vsel %vm339, %v649, 0.0
    %v719 = vadd.f32 %v717, %v718
    %v720 = vsel %vm339, %v650, 0.0
    %v721 = vadd.f32 %v719, %v720
    %v722 = vrot.slane %v721, 4
    %v723 = vadd.f32 %v721, %v722
    %v724 = vrot.slane %v723, 2
    %v725 = vadd.f32 %v723, %v724
    %v726 = vrot.slane %v725, 1
    %v727 = vadd.f32 %v725, %v726
    %v728 = vsel %vm339, %v651, 0.0
    %v729 = vsel %vm339, %v652, 0.0
    %v730 = vadd.f32 %v728, %v729
    %v731 = vsel %vm339, %v653, 0.0
    %v732 = vadd.f32 %v730, %v731
    %v733 = vsel %vm339, %v654, 0.0
    %v734 = vadd.f32 %v732, %v733
    %v735 = vrot.slane %v734, 4
    %v736 = vadd.f32 %v734, %v735
    %v737 = vrot.slane %v736, 2
    %v738 = vadd.f32 %v736, %v737
    %v739 = vrot.slane %v738, 1
    %v740 = vadd.f32 %v738, %v739
    %v741 = vsel %vm339, %v655, 0.0
    %v742 = vsel %vm339, %v656, 0.0
    %v743 = vadd.f32 %v741, %v742
    %v744 = vsel %vm339, %v657, 0.0
    %v745 = vadd.f32 %v743, %v744
    %v746 = vsel %vm339, %v658, 0.0
    %v747 = vadd.f32 %v745, %v746
    %v748 = vrot.slane %v747, 4
    %v749 = vadd.f32 %v747, %v748
    %v750 = vrot.slane %v749, 2
    %v751 = vadd.f32 %v749, %v750
    %v752 = vrot.slane %v751, 1
    %v753 = vadd.f32 %v751, %v752
    %v754 = vsel %vm339, %v659, 0.0
    %v755 = vsel %vm339, %v660, 0.0
    %v756 = vadd.f32 %v754, %v755
    %v757 = vsel %vm339, %v661, 0.0
    %v758 = vadd.f32 %v756, %v757
    %v759 = vsel %vm339, %v662, 0.0
    %v760 = vadd.f32 %v758, %v759
    %v761 = vrot.slane %v760, 4
    %v762 = vadd.f32 %v760, %v761
    %v763 = vrot.slane %v762, 2
    %v764 = vadd.f32 %v762, %v763
    %v765 = vrot.slane %v764, 1
    %v766 = vadd.f32 %v764, %v765
    %768 = vset.pattern.permute.xlu0 0
    %769 = vperm.xlu0 %768, %v146
    %v770 = vpop.permute.xlu0 %769
    %v771 = vrot.slane %v770, 1
    %v772 = vrot.slane %v770, 2
    %v773 = vrot.slane %v770, 3
    %v774 = vrot.slane %v770, 4
    %v775 = vrot.slane %v770, 5
    %v776 = vrot.slane %v770, 6
    %v777 = vrot.slane %v770, 7
    %v786 = vadd.f32 %v675, %v770
    %v787 = vadd.f32 %v688, %v771
    %v788 = vadd.f32 %v701, %v772
    %v789 = vadd.f32 %v714, %v773
    %v790 = vadd.f32 %v727, %v774
    %v791 = vadd.f32 %v740, %v775
    %v792 = vadd.f32 %v753, %v776
    %v793 = vadd.f32 %v766, %v777
    %v802 = vrot.slane %v464, 7
    %vm803 = vcmask 1041409
    %v804 = vsel %vm803, %v802, %v463
    %v805 = vrot.slane %v465, 6
    %vm806 = vcmask 1042434
    %v807 = vsel %vm806, %v805, %v804
    %v808 = vrot.slane %v466, 5
    %vm809 = vcmask 1043459
    %v810 = vsel %vm809, %v808, %v807
    %v811 = vrot.slane %v467, 4
    %vm812 = vcmask 1044484
    %v813 = vsel %vm812, %v811, %v810
    %v814 = vrot.slane %v468, 3
    %vm815 = vcmask 1045509
    %v816 = vsel %vm815, %v814, %v813
    %v817 = vrot.slane %v469, 2
    %vm818 = vcmask 1046534
    %v819 = vsel %vm818, %v817, %v816
    %v820 = vrot.slane %v470, 1
    %vm821 = vcmask 1047559
    %v822 = vsel %vm821, %v820, %v819
    %824 = vst.msk [vmem:[#allocation2] sm:$0xff] %vm339, %v822
    %v833 = vrot.slane %v787, 7
    %v834 = vsel %vm803, %v833, %v786
    %v835 = vrot.slane %v788, 6
    %v836 = vsel %vm806, %v835, %v834
    %v837 = vrot.slane %v789, 5
    %v838 = vsel %vm809, %v837, %v836
    %v839 = vrot.slane %v790, 4
    %v840 = vsel %vm812, %v839, %v838
    %v841 = vrot.slane %v791, 3
    %v842 = vsel %vm815, %v841, %v840
    %v843 = vrot.slane %v792, 2
    %v844 = vsel %vm818, %v843, %v842
    %v845 = vrot.slane %v793, 1
    %v846 = vsel %vm821, %v845, %v844
    %s848 = scalar_lea.vmem [#allocation2], 8
    %849 = vst.msk [vmem:[%s848] sm:$0xff] %vm339, %v846
    // Predicated region
    $region14: #{tpu_custom_call.1} parent=1 // pred_check
      _
    $region15: #{tpu_custom_call.1} parent=1 // pred_check_branch
      %851 = sbr.rel (0) target = $region17
    $region16: #{tpu_custom_call.1} parent=1 // pred_region
      %s853 = ssub.s32 256, 256
      %854 = vsyncadd [#allocation3], %s853
      %s855 = sshll.u32 [#allocation2], 4
      %s856 = int_to_ptr.vmem [resolvable:$true] %s855
      %861 = dma.vmem_to_hbm [thread:$0]  %s856, 256, %s3, [#allocation3], 128, 128, 8
    $region17: #{tpu_custom_call.1} parent=1 // pred_fallthru
      _
    // Predicated region
    $region18: #{tpu_custom_call.1} parent=1 // pred_check
      _
    $region19: #{tpu_custom_call.1} parent=1 // pred_check_branch
      %863 = sbr.rel (0) target = $region21
    $region20: #{tpu_custom_call.1} parent=1 // pred_region
      %864 = dma.done [#allocation3], 256
    $region21: #{tpu_custom_call.1} parent=1 // pred_fallthru
      _
    %865 = vsyncpa [#allocation3], 1

</llo_original>
